<compile_context>
chip_gen: v6e
topology: v6e:2x2x1
jax: 0.10.0
libtpu: 0.0.40
codegen_flags: <defaults>
</compile_context>

<pallas_src>
import jax
import jax.numpy as jnp
from jax import lax
from jax.experimental import pallas as pl
from jax.experimental.pallas import tpu as pltpu


_VMEM_LIMIT = 32 * 1024 * 1024  # explicit scoped-VMEM budget, safe on v5e/v6e/v7x


# --------------------------------------------------------------------------- #
# Kernel A: BN(scale/shift) + ReLU + 1x1 conv  (a plain MXU matmul)
# --------------------------------------------------------------------------- #
def _bn_relu_conv1x1_kernel(x_ref, scale_ref, shift_ref, w_ref, o_ref):
    # x_ref: (row_tile, Cin)  scale/shift: (1, Cin)  w: (Cin, Cout)  o: (row_tile, Cout)
    act = jnp.maximum(x_ref[...] * scale_ref[...] + shift_ref[...], 0.0)
    o_ref[...] = jnp.dot(act.astype(w_ref.dtype), w_ref[...],
                         preferred_element_type=jnp.float32)


def bn_relu_conv1x1(x, scale, shift, w, *, row_tile):
    # x: (N, HW, Cin) f32, w: (Cin, Cout) compute dtype -> (N, HW, Cout) f32
    N, HW, Cin = x.shape
    Cout = w.shape[1]
    grid = (N, HW // row_tile)
    return pl.pallas_call(
        _bn_relu_conv1x1_kernel,
        out_shape=jax.ShapeDtypeStruct((N, HW, Cout), jnp.float32),
        grid=grid,
        in_specs=[
            pl.BlockSpec((None, row_tile, Cin), lambda n, r: (n, r, 0)),
            pl.BlockSpec((1, Cin), lambda n, r: (0, 0)),
            pl.BlockSpec((1, Cin), lambda n, r: (0, 0)),
            pl.BlockSpec((Cin, Cout), lambda n, r: (0, 0)),
        ],
        out_specs=pl.BlockSpec((None, row_tile, Cout), lambda n, r: (n, r, 0)),
        compiler_params=pltpu.CompilerParams(
            dimension_semantics=("parallel", "parallel"),
            vmem_limit_bytes=_VMEM_LIMIT),
    )(x, scale, shift, w)


# --------------------------------------------------------------------------- #
# Kernel B: BN(scale/shift) + ReLU + 3x3 conv (padding=1) via 9 shifted matmuls
# --------------------------------------------------------------------------- #
def _bn_relu_conv3x3_kernel(y_ref, scale_ref, shift_ref, w_ref, o_ref, pad_ref):
    # y_ref: (H, W, C)  scale/shift: (1, 1, C)  w_ref: (3, 3, C, G)
    # o_ref: (H, W, G)  pad_ref (scratch): (H+2, W+2, C) f32
    H, W, C = y_ref.shape
    G = o_ref.shape[-1]

    act = jnp.maximum(y_ref[...] * scale_ref[...] + shift_ref[...], 0.0)

    # zero-padded activation staged in VMEM (padding happens AFTER BN+ReLU,
    # matching nn.Conv2d(padding=1) semantics).
    pad_ref[...] = jnp.zeros_like(pad_ref)
    pad_ref[1:H + 1, 1:W + 1, :] = act

    acc = jnp.zeros((H * W, G), jnp.float32)
    for dh in range(3):
        for dw in range(3):
            win = pad_ref[dh:dh + H, dw:dw + W, :].reshape(H * W, C)
            acc = acc + jnp.dot(win.astype(w_ref.dtype), w_ref[dh, dw],
                                preferred_element_type=jnp.float32)
    o_ref[...] = acc.reshape(H, W, G)


def bn_relu_conv3x3(y, scale, shift, w):
    # y: (N, H, W, C) f32, w: (3, 3, C, G) compute dtype -> (N, H, W, G) f32
    N, H, W, C = y.shape
    G = w.shape[-1]
    return pl.pallas_call(
        _bn_relu_conv3x3_kernel,
        out_shape=jax.ShapeDtypeStruct((N, H, W, G), jnp.float32),
        grid=(N,),
        in_specs=[
            pl.BlockSpec((None, H, W, C), lambda n: (n, 0, 0, 0)),
            pl.BlockSpec((1, 1, C), lambda n: (0, 0, 0)),
            pl.BlockSpec((1, 1, C), lambda n: (0, 0, 0)),
            pl.BlockSpec((3, 3, C, G), lambda n: (0, 0, 0, 0)),
        ],
        out_specs=pl.BlockSpec((None, H, W, G), lambda n: (n, 0, 0, 0)),
        scratch_shapes=[pltpu.VMEM((H + 2, W + 2, C), jnp.float32)],
        compiler_params=pltpu.CompilerParams(
            dimension_semantics=("parallel",),
            vmem_limit_bytes=_VMEM_LIMIT),
    )(y, scale, shift, w)


# --------------------------------------------------------------------------- #
# Host-side glue
# --------------------------------------------------------------------------- #
def _bn_scale_shift(x_nhwc, gamma, beta, eps):
    """Training-mode BN batch stats, single fused sum / sum-of-squares pass,
    folded into per-channel scale/shift (f32 accumulation)."""
    C = x_nhwc.shape[-1]
    flat = x_nhwc.reshape(-1, C).astype(jnp.float32)
    n = flat.shape[0]
    s = jnp.sum(flat, axis=0)
    sq = jnp.sum(flat * flat, axis=0)
    mean = s / n
    var = jnp.maximum(sq / n - mean * mean, 0.0)  # biased variance
    inv_std = lax.rsqrt(var + eps)
    scale = gamma.astype(jnp.float32) * inv_std
    shift = beta.astype(jnp.float32) - mean * scale
    return scale, shift


def _pick_row_tile(hw, max_rows=1024):
    """Largest multiple-of-8 divisor of hw that is <= max_rows (fallback: hw)."""
    best = hw
    for t in range(8, min(hw, max_rows) + 1, 8):
        if hw % t == 0:
            best = t
    return best


def dense_block_forward(x_nchw, params, *, eps=1e-5, compute_dtype=jnp.bfloat16):
    """DenseBlock forward (list of BottleneckLayer params), NCHW in/out."""
    N, _, H, W = x_nchw.shape
    feat = jnp.transpose(x_nchw, (0, 2, 3, 1)).astype(jnp.float32)  # NHWC

    for p in params:
        cin = feat.shape[-1]
        c_mid = p["w1"].shape[0]      # 4 * growth_rate
        g = p["w2"].shape[0]          # growth_rate

        # ---- BN1 + ReLU + 1x1 conv ----
        scale1, shift1 = _bn_scale_shift(feat, p["gamma1"], p["beta1"], eps)
        w1 = jnp.transpose(p["w1"].reshape(c_mid, cin), (1, 0)).astype(compute_dtype)
        row_tile = _pick_row_tile(H * W)
        y = bn_relu_conv1x1(feat.reshape(N, H * W, cin),
                            scale1.reshape(1, cin), shift1.reshape(1, cin),
                            w1, row_tile=row_tile)
        y = y.reshape(N, H, W, c_mid)

        # ---- BN2 + ReLU + 3x3 conv (padding=1) ----
        scale2, shift2 = _bn_scale_shift(y, p["gamma2"], p["beta2"], eps)
        w2 = jnp.transpose(p["w2"], (2, 3, 1, 0)).astype(compute_dtype)  # (3,3,c_mid,g)
        out = bn_relu_conv3x3(y, scale2.reshape(1, 1, c_mid),
                              shift2.reshape(1, 1, c_mid), w2)

        # ---- dense concat (channel axis) ----
        # TODO(synk): for large real shapes, write `out` directly into a
        # preallocated channel slab via input_output_aliases to avoid this pass.
        feat = jnp.concatenate([feat, out], axis=-1)

    return jnp.transpose(feat, (0, 3, 1, 2))


# --------------------------------------------------------------------------- #
# Pure-JAX reference matching the PyTorch forward (training-mode BN)
# --------------------------------------------------------------------------- #
def _reference(x_nchw, params, eps=1e-5):
    def bn(z, gamma, beta):
        m = jnp.mean(z, axis=(0, 2, 3), keepdims=True)
        v = jnp.mean((z - m) ** 2, axis=(0, 2, 3), keepdims=True)
        return ((z - m) / jnp.sqrt(v + eps)) * gamma.reshape(1, -1, 1, 1) \
            + beta.reshape(1, -1, 1, 1)

    feat = x_nchw
    for p in params:
        a1 = jnp.maximum(bn(feat, p["gamma1"], p["beta1"]), 0.0)
        y = lax.conv_general_dilated(a1, p["w1"], (1, 1), "VALID",
                                     dimension_numbers=("NCHW", "OIHW", "NCHW"))
        a2 = jnp.maximum(bn(y, p["gamma2"], p["beta2"]), 0.0)
        out = lax.conv_general_dilated(a2, p["w2"], (1, 1), ((1, 1), (1, 1)),
                                       dimension_numbers=("NCHW", "OIHW", "NCHW"))
        feat = jnp.concatenate([feat, out], axis=1)
    return feat


if __name__ == "__main__":
    key = jax.random.PRNGKey(0)
    N, C0, H, W = 2, 4, 16, 16
    growth_rate = 4
    n_layers = 2

    keys = jax.random.split(key, 1 + 6 * n_layers)
    x = jax.random.normal(keys[0], (N, C0, H, W), dtype=jnp.float32)

    params = []
    cin = C0
    ki = 1
    for i in range(n_layers):
        c_mid = 4 * growth_rate
        gamma1 = 1.0 + 0.1 * jax.random.normal(keys[ki + 0], (cin,), jnp.float32)
        beta1 = 0.1 * jax.random.normal(keys[ki + 1], (cin,), jnp.float32)
        w1 = jax.random.normal(keys[ki + 2], (c_mid, cin, 1, 1), jnp.float32) \
            * (1.0 / jnp.sqrt(cin))
        gamma2 = 1.0 + 0.1 * jax.random.normal(keys[ki + 3], (c_mid,), jnp.float32)
        beta2 = 0.1 * jax.random.normal(keys[ki + 4], (c_mid,), jnp.float32)
        w2 = jax.random.normal(keys[ki + 5], (growth_rate, c_mid, 3, 3), jnp.float32) \
            * (1.0 / jnp.sqrt(9.0 * c_mid))
        params.append(dict(gamma1=gamma1, beta1=beta1, w1=w1,
                           gamma2=gamma2, beta2=beta2, w2=w2))
        cin += growth_rate
        ki += 6

    ref = _reference(x, params)

    # f32 MXU path: tight verification of the kernel logic.
    out_f32 = jax.block_until_ready(
        dense_block_forward(x, params, compute_dtype=jnp.float32))
    assert out_f32.shape == (N, C0 + n_layers * growth_rate, H, W), out_f32.shape
    assert jnp.allclose(out_f32, ref, atol=2e-4, rtol=2e-4), \
        float(jnp.max(jnp.abs(out_f32 - ref)))

    # bf16 MXU operands (production default, f32 accumulation): looser check.
    out_bf16 = jax.block_until_ready(
        dense_block_forward(x, params, compute_dtype=jnp.bfloat16))
    assert out_bf16.shape == out_f32.shape
    assert jnp.allclose(out_bf16, ref, atol=1e-1, rtol=1e-1), \
        float(jnp.max(jnp.abs(out_bf16 - ref)))

    print("KERNEL_OK")
</pallas_src>

<mosaic_0001>
module attributes {stable_mosaic.version = 11 : i64} {
  func.func @_bn_relu_conv1x1_kernel(%arg0: i32, %arg1: i32, %arg2: memref<1x256x4xf32, #tpu.memory_space<vmem>>, %arg3: memref<1x4xf32, #tpu.memory_space<vmem>>, %arg4: memref<1x4xf32, #tpu.memory_space<vmem>>, %arg5: memref<4x16xf32, #tpu.memory_space<vmem>>, %arg6: memref<1x256x16xf32, #tpu.memory_space<vmem>>) attributes {dimension_semantics = [#tpu.dimension_semantics<parallel>, #tpu.dimension_semantics<parallel>], iteration_bounds = array<i64: 2, 1>, scalar_prefetch = 0 : i64, scratch_operands = 0 : i64, tpu.core_type = #tpu.core_type<tc>, window_params = [{transform_indices = @transform_0, window_bounds = array<i64: 1, 256, 4>}, {pipeline_mode = #tpu.pipeline_mode<synchronous>, transform_indices = @transform_1, window_bounds = array<i64: 1, 4>}, {pipeline_mode = #tpu.pipeline_mode<synchronous>, transform_indices = @transform_2, window_bounds = array<i64: 1, 4>}, {pipeline_mode = #tpu.pipeline_mode<synchronous>, transform_indices = @transform_3, window_bounds = array<i64: 4, 16>}, {transform_indices = @transform_4, window_bounds = array<i64: 1, 256, 16>}]} {
    %c0 = arith.constant 0 : index
    %c0_0 = arith.constant 0 : index
    %c0_1 = arith.constant 0 : index
    %0 = vector.load %arg2[%c0, %c0_0, %c0_1] : memref<1x256x4xf32, #tpu.memory_space<vmem>>, vector<1x256x4xf32>
    %1 = vector.shape_cast %0 : vector<1x256x4xf32> to vector<256x4xf32>
    %c0_2 = arith.constant 0 : index
    %c0_3 = arith.constant 0 : index
    %2 = vector.load %arg3[%c0_2, %c0_3] : memref<1x4xf32, #tpu.memory_space<vmem>>, vector<1x4xf32>
    %3 = vector.broadcast %2 : vector<1x4xf32> to vector<256x4xf32>
    %4 = arith.mulf %1, %3 : vector<256x4xf32>
    %c0_4 = arith.constant 0 : index
    %c0_5 = arith.constant 0 : index
    %5 = vector.load %arg4[%c0_4, %c0_5] : memref<1x4xf32, #tpu.memory_space<vmem>>, vector<1x4xf32>
    %6 = vector.broadcast %5 : vector<1x4xf32> to vector<256x4xf32>
    %7 = arith.addf %4, %6 : vector<256x4xf32>
    %cst = arith.constant 0.000000e+00 : f32
    %8 = vector.broadcast %cst : f32 to vector<256x4xf32>
    %9 = arith.maximumf %7, %8 : vector<256x4xf32>
    %c0_6 = arith.constant 0 : index
    %c0_7 = arith.constant 0 : index
    %10 = vector.load %arg5[%c0_6, %c0_7] : memref<4x16xf32, #tpu.memory_space<vmem>>, vector<4x16xf32>
    %cst_8 = arith.constant dense<0.000000e+00> : vector<256x16xf32>
    %11 = tpu.matmul %9, %10, %cst_8 {dimension_numbers = #tpu.dot_dimension_numbers<[1], [0], [0], [1], [0, 0, 1, 1], [], []>} : vector<256x4xf32>, vector<4x16xf32>, vector<256x16xf32> -> vector<256x16xf32>
    %c0_9 = arith.constant 0 : index
    %c0_10 = arith.constant 0 : index
    %c0_11 = arith.constant 0 : index
    %12 = vector.load %arg6[%c0_9, %c0_10, %c0_11] : memref<1x256x16xf32, #tpu.memory_space<vmem>>, vector<1x256x16xf32>
    %13 = vector.shape_cast %12 : vector<1x256x16xf32> to vector<256x16xf32>
    %14 = vector.shape_cast %11 : vector<256x16xf32> to vector<1x256x16xf32>
    tpu.vector_store %arg6[%c0_9, %c0_10, %c0_11], %14 {strides = array<i32>} : memref<1x256x16xf32, #tpu.memory_space<vmem>>, vector<1x256x16xf32>,
    return
  }
  func.func @transform_0(%arg0: i32, %arg1: i32) -> (i32, i32, i32) {
    %c0_i32 = arith.constant 0 : i32
    %c0_i32_0 = arith.constant 0 : i32
    return %arg0, %arg1, %c0_i32 : i32, i32, i32
  }
  func.func @transform_1(%arg0: i32, %arg1: i32) -> (i32, i32) {
    %c0_i32 = arith.constant 0 : i32
    %c0_i32_0 = arith.constant 0 : i32
    %c0_i32_1 = arith.constant 0 : i32
    return %c0_i32, %c0_i32_0 : i32, i32
  }
  func.func @transform_2(%arg0: i32, %arg1: i32) -> (i32, i32) {
    %c0_i32 = arith.constant 0 : i32
    %c0_i32_0 = arith.constant 0 : i32
    %c0_i32_1 = arith.constant 0 : i32
    return %c0_i32, %c0_i32_0 : i32, i32
  }
  func.func @transform_3(%arg0: i32, %arg1: i32) -> (i32, i32) {
    %c0_i32 = arith.constant 0 : i32
    %c0_i32_0 = arith.constant 0 : i32
    %c0_i32_1 = arith.constant 0 : i32
    return %c0_i32, %c0_i32_0 : i32, i32
  }
  func.func @transform_4(%arg0: i32, %arg1: i32) -> (i32, i32, i32) {
    %c0_i32 = arith.constant 0 : i32
    %c0_i32_0 = arith.constant 0 : i32
    return %arg0, %arg1, %c0_i32 : i32, i32, i32
  }
}

</mosaic_0001>

<llo_original>
// kernel: tpu_custom_call.1
$region0: #{tpu_custom_call.1}
  #allocation0 [shape = 'u32[]', space=smem, size = 0x4, offset = 0x4, fixed_abs, tag = 'smem constant byte address 0x4 - core index']
  #allocation1 [shape = 'u32[144,128]{1,0:T(1,128)}', space=vmem, size = 0x12000, scoped, tag = 'internal scratch']
  %s0 = inlined_call_operand.vmem [shape: f32[2,256,4], index: 0, kind: input, shape index: {}]
  %s1 = inlined_call_operand.vmem [shape: f32[1,4], index: 1, kind: input, shape index: {}]
  %s2 = inlined_call_operand.vmem [shape: f32[1,4], index: 2, kind: input, shape index: {}]
  %s3 = inlined_call_operand.vmem [shape: f32[4,16], index: 3, kind: input, shape index: {}]
  %s4 = inlined_call_operand.vmem [shape: f32[2,256,16], index: 4, kind: output, shape index: {}]
  %s5 = sld [smem:[#allocation0]]
  $region49: #{tpu_custom_call.1} parent=0
    _
  %s7 = ssub.s32 1, %s5
  %s8 = scalar_select 0, %s7, %s5
  loop: start=0, step=1, limit=4
  $region2: #{tpu_custom_call.1} parent=0 // loop_pre_header
    _
  $region3: #{tpu_custom_call.1} parent=0 // loop_header
    %s10 = sphi 0, %s14
    %p11 = scmp.ge.s32.totalorder %s10, 4
    %s17 = sphi 0, %s29
    %s18 = sphi 0, %s25
    %s19 = sphi 0, %s17
    %s20 = sphi 0, %s18
    %s21 = sphi 0, %s19
    %s22 = sphi 0, %s20
    %s34 = sphi 0, %s36
    %s37 = sphi 0, %s34
    %s38 = sphi 0, %s37
    %s54 = sphi 0, %s38
    %s58 = sphi 0, %s58
    %s60 = sphi 0, %s58
    %s61 = sphi 0, %s60
    %s75 = sphi 0, %s61
    %s79 = sphi 0, %s79
    %s81 = sphi 0, %s79
    %s82 = sphi 0, %s81
    %s96 = sphi 0, %s82
    %s100 = sphi 0, %s100
    %s102 = sphi 0, %s100
    %s103 = sphi 0, %s102
    %s117 = sphi 0, %s103
    %s125 = sphi 0, %s127
    %s128 = sphi 0, %s125
    %s129 = sphi 0, %s128
    %s145 = sphi 0, %s129
  $region4: #{tpu_custom_call.1} parent=0 // loop_header_branch
    %13 = sbr.rel (%p11) target = $region8
  $region5: #{tpu_custom_call.1} parent=0 // loop_body
    %s15 = ssub.s32 %s10, 1
    %s16 = ssub.s32 %s10, 2
    %s23 = sadd.s32 1, %s18
    %p24 = scmp.ge.s32.totalorder %s23, 1
    %s25 = scalar_select %p24, 0, %s23
    %s26 = sadd.s32 1, %s17
    %s27 = scalar_select %p24, %s26, %s17
    %p28 = scmp.ge.s32.totalorder %s27, 2
    %s29 = scalar_select %p28, 0, %s27
    %s30 = ssub.s32 %s17, %s29
    %s31 = ssub.s32 %s18, %s25
    %s32 = sor.u32 %s30, %s31
    %p33 = scmp.eq.s32.totalorder %s32, 0
    %s35 = sadd.s32 %s34, 1
    %s36 = scalar_select %p33, %s34, %s35
    %p39 = pneg %p33
    %p40 = scmp.eq.s32.totalorder %s10, 1
    %p41 = por %p39, %p40
    %p42 = scmp.ne.s32.totalorder %s34, %s37
    %p43 = scmp.eq.s32.totalorder %s10, 0
    %p44 = por %p42, %p43
    %p45 = scmp.ne.s32.totalorder %s34, %s37
    %p46 = scmp.eq.s32.totalorder %s15, 1
    %p47 = por %p45, %p46
    %p48 = scmp.ne.s32.totalorder %s37, %s38
    %p49 = scmp.eq.s32.totalorder %s15, 0
    %p50 = por %p48, %p49
    %p51 = scmp.ne.s32.totalorder %s37, %s38
    %p52 = scmp.eq.s32.totalorder %s16, 1
    %p53 = por %p51, %p52
    %p55 = scmp.ne.s32.totalorder %s38, %s54
    %p56 = scmp.eq.s32.totalorder %s16, 0
    %p57 = por %p55, %p56
    %s59 = sadd.s32 %s58, 1
    %p62 = scmp.eq.s32.totalorder %s10, 1
    %p63 = scmp.ne.s32.totalorder %s58, %s60
    %p64 = scmp.eq.s32.totalorder %s10, 0
    %p65 = por %p63, %p64
    %p66 = scmp.ne.s32.totalorder %s58, %s60
    %p67 = scmp.eq.s32.totalorder %s15, 1
    %p68 = por %p66, %p67
    %p69 = scmp.ne.s32.totalorder %s60, %s61
    %p70 = scmp.eq.s32.totalorder %s15, 0
    %p71 = por %p69, %p70
    %p72 = scmp.ne.s32.totalorder %s60, %s61
    %p73 = scmp.eq.s32.totalorder %s16, 1
    %p74 = por %p72, %p73
    %p76 = scmp.ne.s32.totalorder %s61, %s75
    %p77 = scmp.eq.s32.totalorder %s16, 0
    %p78 = por %p76, %p77
    %s80 = sadd.s32 %s79, 1
    %p83 = scmp.eq.s32.totalorder %s10, 1
    %p84 = scmp.ne.s32.totalorder %s79, %s81
    %p85 = scmp.eq.s32.totalorder %s10, 0
    %p86 = por %p84, %p85
    %p87 = scmp.ne.s32.totalorder %s79, %s81
    %p88 = scmp.eq.s32.totalorder %s15, 1
    %p89 = por %p87, %p88
    %p90 = scmp.ne.s32.totalorder %s81, %s82
    %p91 = scmp.eq.s32.totalorder %s15, 0
    %p92 = por %p90, %p91
    %p93 = scmp.ne.s32.totalorder %s81, %s82
    %p94 = scmp.eq.s32.totalorder %s16, 1
    %p95 = por %p93, %p94
    %p97 = scmp.ne.s32.totalorder %s82, %s96
    %p98 = scmp.eq.s32.totalorder %s16, 0
    %p99 = por %p97, %p98
    %s101 = sadd.s32 %s100, 1
    %p104 = scmp.eq.s32.totalorder %s10, 1
    %p105 = scmp.ne.s32.totalorder %s100, %s102
    %p106 = scmp.eq.s32.totalorder %s10, 0
    %p107 = por %p105, %p106
    %p108 = scmp.ne.s32.totalorder %s100, %s102
    %p109 = scmp.eq.s32.totalorder %s15, 1
    %p110 = por %p108, %p109
    %p111 = scmp.ne.s32.totalorder %s102, %s103
    %p112 = scmp.eq.s32.totalorder %s15, 0
    %p113 = por %p111, %p112
    %p114 = scmp.ne.s32.totalorder %s102, %s103
    %p115 = scmp.eq.s32.totalorder %s16, 1
    %p116 = por %p114, %p115
    %p118 = scmp.ne.s32.totalorder %s103, %s117
    %p119 = scmp.eq.s32.totalorder %s16, 0
    %p120 = por %p118, %p119
    %s121 = ssub.s32 %s17, %s29
    %s122 = ssub.s32 %s18, %s25
    %s123 = sor.u32 %s121, %s122
    %p124 = scmp.eq.s32.totalorder %s123, 0
    %s126 = sadd.s32 %s125, 1
    %s127 = scalar_select %p124, %s125, %s126
    %p130 = pneg %p124
    %p131 = scmp.eq.s32.totalorder %s10, 1
    %p132 = por %p130, %p131
    %p133 = scmp.ne.s32.totalorder %s125, %s128
    %p134 = scmp.eq.s32.totalorder %s10, 0
    %p135 = por %p133, %p134
    %p136 = scmp.ne.s32.totalorder %s125, %s128
    %p137 = scmp.eq.s32.totalorder %s15, 1
    %p138 = por %p136, %p137
    %p139 = scmp.ne.s32.totalorder %s128, %s129
    %p140 = scmp.eq.s32.totalorder %s15, 0
    %p141 = por %p139, %p140
    %p142 = scmp.ne.s32.totalorder %s128, %s129
    %p143 = scmp.eq.s32.totalorder %s16, 1
    %p144 = por %p142, %p143
    %p146 = scmp.ne.s32.totalorder %s129, %s145
    %p147 = scmp.eq.s32.totalorder %s16, 0
    %p148 = por %p146, %p147
    %p149 = scmp.le.s32.totalorder 1, %s10
    %p150 = scmp.lt.s32.totalorder %s10, 3
    %p151 = pnand %p149, %p150
    %p152 = pneg %p151
    // Predicated region
    $region9: #{tpu_custom_call.1} parent=5 // pred_check
      _
    $region10: #{tpu_custom_call.1} parent=5 // pred_check_branch
      %154 = sbr.rel (%p151) target = $region12
    $region11: #{tpu_custom_call.1} parent=5 // pred_region
      %s155 = ssub.s32 %s10, 1
      // Predicated region
      $region13: #{tpu_custom_call.1} parent=11 // pred_check
        %p156 = pneg %p71
      $region14: #{tpu_custom_call.1} parent=11 // pred_check_branch
        %158 = sbr.rel (%p156) target = $region16
      $region15: #{tpu_custom_call.1} parent=11 // pred_region
        _
      $region16: #{tpu_custom_call.1} parent=11 // pred_fallthru
        _
      // Predicated region
      $region17: #{tpu_custom_call.1} parent=11 // pred_check
        %p159 = pneg %p92
      $region18: #{tpu_custom_call.1} parent=11 // pred_check_branch
        %161 = sbr.rel (%p159) target = $region20
      $region19: #{tpu_custom_call.1} parent=11 // pred_region
        _
      $region20: #{tpu_custom_call.1} parent=11 // pred_fallthru
        _
      // Predicated region
      $region21: #{tpu_custom_call.1} parent=11 // pred_check
        %p162 = pneg %p113
      $region22: #{tpu_custom_call.1} parent=11 // pred_check_branch
        %164 = sbr.rel (%p162) target = $region24
      $region23: #{tpu_custom_call.1} parent=11 // pred_region
        _
      $region24: #{tpu_custom_call.1} parent=11 // pred_fallthru
        _
    $region12: #{tpu_custom_call.1} parent=5 // pred_fallthru
      _
    %p165 = scmp.lt.s32.totalorder %s10, 2
    // Predicated region
    $region25: #{tpu_custom_call.1} parent=5 // pred_check
      %p166 = pneg %p165
    $region26: #{tpu_custom_call.1} parent=5 // pred_check_branch
      %168 = sbr.rel (%p166) target = $region28
    $region27: #{tpu_custom_call.1} parent=5 // pred_region
      // Predicated region
      $region29: #{tpu_custom_call.1} parent=27 // pred_check
        %p169 = pneg %p44
      $region30: #{tpu_custom_call.1} parent=27 // pred_check_branch
        %171 = sbr.rel (%p169) target = $region32
      $region31: #{tpu_custom_call.1} parent=27 // pred_region
        %s172 = smul.u32 32, %s18
        %p173 = scmp.lt.s32.totalorder %s17, 1
        %s174 = scalar_select %p173, %s17, 1
        %p175 = scmp.lt.s32.totalorder %s172, 31
        %s176 = scalar_select %p175, %s172, 31
        %s177 = smul.addr %s174, 32
        %s178 = sadd.s32 %s176, %s177
        %s179 = smul.addr %s178, 8
        %s180 = scalar_lea.vmem %s0, %s179
        %s181 = smul.u32 32, %s18
      $region32: #{tpu_custom_call.1} parent=27 // pred_fallthru
        _
    $region28: #{tpu_custom_call.1} parent=5 // pred_fallthru
      _
    %p182 = scmp.le.s32.totalorder 1, %s10
    %p183 = scmp.lt.s32.totalorder %s10, 3
    %p184 = pnand %p182, %p183
    %p185 = pneg %p184
    // Predicated region
    $region33: #{tpu_custom_call.1} parent=5 // pred_check
      _
    $region34: #{tpu_custom_call.1} parent=5 // pred_check_branch
      %187 = sbr.rel (%p184) target = $region36
    $region35: #{tpu_custom_call.1} parent=5 // pred_region
      %s188 = ssub.s32 %s10, 1
      %s189 = smul.u32 32, %s20
      %p190 = scmp.lt.s32.totalorder %s19, 1
      %s191 = scalar_select %p190, %s19, 1
      %p192 = scmp.lt.s32.totalorder %s189, 31
      %s193 = scalar_select %p192, %s189, 31
      %s194 = smul.addr %s191, 32
      %s195 = sadd.s32 %s193, %s194
      %s196 = smul.addr %s195, 8
      %s197 = scalar_lea.vmem %s0, %s196
      %p198 = pneg %p50
      %p199 = pneg %p47
      %p200 = pneg %p71
      %p201 = pneg %p68
      %p202 = pneg %p92
      %p203 = pneg %p89
      %p204 = pneg %p113
      %p205 = pneg %p110
      %p206 = pneg %p141
      %p207 = pneg %p138
      %s208 = smul.u32 32, %s20
      %p209 = scmp.lt.s32.totalorder %s19, 1
      %s210 = scalar_select %p209, %s19, 1
      %p211 = scmp.lt.s32.totalorder %s208, 31
      %s212 = scalar_select %p211, %s208, 31
      %s213 = smul.addr %s210, 32
      %s214 = sadd.s32 %s212, %s213
      %s215 = smul.addr %s214, 8
      %s216 = scalar_lea.vmem %s4, %s215
      %s217 = smul.u32 32, %s20
      %p218 = scmp.lt.s32.totalorder %s19, 1
      %s219 = scalar_select %p218, %s19, 1
      %p220 = scmp.lt.s32.totalorder %s217, 31
      %s221 = scalar_select %p220, %s217, 31
      %s222 = smul.addr %s219, 32
      %s223 = sadd.s32 %s221, %s222
      %s224 = smul.addr %s223, 8
      %s225 = scalar_lea.vmem %s0, %s224
      %s226 = smul.u32 32, %s20
      %s227 = smul.u32 32, %s20
      %p228 = scmp.lt.s32.totalorder %s19, 1
      %s229 = scalar_select %p228, %s19, 1
      %p230 = scmp.lt.s32.totalorder %s227, 31
      %s231 = scalar_select %p230, %s227, 31
      %s232 = smul.addr %s229, 32
      %s233 = sadd.s32 %s231, %s232
      %s234 = smul.addr %s233, 8
      %s235 = scalar_lea.vmem %s4, %s234
      %s236 = smul.u32 32, %s20
      %v237 = vld [vmem:[%s225] sm:$0xff]
      %v238 = vld [vmem:[%s225 + $0x8] sm:$0xff]
      %v239 = vld [vmem:[%s225 + $0x10] sm:$0xff]
      %v240 = vld [vmem:[%s225 + $0x18] sm:$0xff]
      %v241 = vld [vmem:[%s225 + $0x20] sm:$0xff]
      %v242 = vld [vmem:[%s225 + $0x28] sm:$0xff]
      %v243 = vld [vmem:[%s225 + $0x30] sm:$0xff]
      %v244 = vld [vmem:[%s225 + $0x38] sm:$0xff]
      %v245 = vld [vmem:[%s225 + $0x40] sm:$0xff]
      %v246 = vld [vmem:[%s225 + $0x48] sm:$0xff]
      %v247 = vld [vmem:[%s225 + $0x50] sm:$0xff]
      %v248 = vld [vmem:[%s225 + $0x58] sm:$0xff]
      %v249 = vld [vmem:[%s225 + $0x60] sm:$0xff]
      %v250 = vld [vmem:[%s225 + $0x68] sm:$0xff]
      %v251 = vld [vmem:[%s225 + $0x70] sm:$0xff]
      %v252 = vld [vmem:[%s225 + $0x78] sm:$0xff]
      %v253 = vld [vmem:[%s225 + $0x80] sm:$0xff]
      %v254 = vld [vmem:[%s225 + $0x88] sm:$0xff]
      %v255 = vld [vmem:[%s225 + $0x90] sm:$0xff]
      %v256 = vld [vmem:[%s225 + $0x98] sm:$0xff]
      %v257 = vld [vmem:[%s225 + $0xa0] sm:$0xff]
      %v258 = vld [vmem:[%s225 + $0xa8] sm:$0xff]
      %v259 = vld [vmem:[%s225 + $0xb0] sm:$0xff]
      %v260 = vld [vmem:[%s225 + $0xb8] sm:$0xff]
      %v261 = vld [vmem:[%s225 + $0xc0] sm:$0xff]
      %v262 = vld [vmem:[%s225 + $0xc8] sm:$0xff]
      %v263 = vld [vmem:[%s225 + $0xd0] sm:$0xff]
      %v264 = vld [vmem:[%s225 + $0xd8] sm:$0xff]
      %v265 = vld [vmem:[%s225 + $0xe0] sm:$0xff]
      %v266 = vld [vmem:[%s225 + $0xe8] sm:$0xff]
      %v267 = vld [vmem:[%s225 + $0xf0] sm:$0xff]
      %v268 = vld [vmem:[%s225 + $0xf8] sm:$0xff]
      %v269 = vld [vmem:[%s1] sm:$0x1]
      %v271 = vlaneseq
      %v272 = vshrl.u32 %v271, 7
      %v273 = vsub.s32 0, %v272
      %v274 = vrot.slane %v269, %v273
      %v276 = vmul.f32 %v237, %v274
      %v277 = vmul.f32 %v238, %v274
      %v278 = vmul.f32 %v239, %v274
      %v279 = vmul.f32 %v240, %v274
      %v280 = vmul.f32 %v241, %v274
      %v281 = vmul.f32 %v242, %v274
      %v282 = vmul.f32 %v243, %v274
      %v283 = vmul.f32 %v244, %v274
      %v284 = vmul.f32 %v245, %v274
      %v285 = vmul.f32 %v246, %v274
      %v286 = vmul.f32 %v247, %v274
      %v287 = vmul.f32 %v248, %v274
      %v288 = vmul.f32 %v249, %v274
      %v289 = vmul.f32 %v250, %v274
      %v290 = vmul.f32 %v251, %v274
      %v291 = vmul.f32 %v252, %v274
      %v292 = vmul.f32 %v253, %v274
      %v293 = vmul.f32 %v254, %v274
      %v294 = vmul.f32 %v255, %v274
      %v295 = vmul.f32 %v256, %v274
      %v296 = vmul.f32 %v257, %v274
      %v297 = vmul.f32 %v258, %v274
      %v298 = vmul.f32 %v259, %v274
      %v299 = vmul.f32 %v260, %v274
      %v300 = vmul.f32 %v261, %v274
      %v301 = vmul.f32 %v262, %v274
      %v302 = vmul.f32 %v263, %v274
      %v303 = vmul.f32 %v264, %v274
      %v304 = vmul.f32 %v265, %v274
      %v305 = vmul.f32 %v266, %v274
      %v306 = vmul.f32 %v267, %v274
      %v307 = vmul.f32 %v268, %v274
      %v308 = vld [vmem:[%s2] sm:$0x1]
      %v310 = vlaneseq
      %v311 = vshrl.u32 %v310, 7
      %v312 = vsub.s32 0, %v311
      %v313 = vrot.slane %v308, %v312
      %v315 = vadd.f32 %v276, %v313
      %v316 = vadd.f32 %v277, %v313
      %v317 = vadd.f32 %v278, %v313
      %v318 = vadd.f32 %v279, %v313
      %v319 = vadd.f32 %v280, %v313
      %v320 = vadd.f32 %v281, %v313
      %v321 = vadd.f32 %v282, %v313
      %v322 = vadd.f32 %v283, %v313
      %v323 = vadd.f32 %v284, %v313
      %v324 = vadd.f32 %v285, %v313
      %v325 = vadd.f32 %v286, %v313
      %v326 = vadd.f32 %v287, %v313
      %v327 = vadd.f32 %v288, %v313
      %v328 = vadd.f32 %v289, %v313
      %v329 = vadd.f32 %v290, %v313
      %v330 = vadd.f32 %v291, %v313
      %v331 = vadd.f32 %v292, %v313
      %v332 = vadd.f32 %v293, %v313
      %v333 = vadd.f32 %v294, %v313
      %v334 = vadd.f32 %v295, %v313
      %v335 = vadd.f32 %v296, %v313
      %v336 = vadd.f32 %v297, %v313
      %v337 = vadd.f32 %v298, %v313
      %v338 = vadd.f32 %v299, %v313
      %v339 = vadd.f32 %v300, %v313
      %v340 = vadd.f32 %v301, %v313
      %v341 = vadd.f32 %v302, %v313
      %v342 = vadd.f32 %v303, %v313
      %v343 = vadd.f32 %v304, %v313
      %v344 = vadd.f32 %v305, %v313
      %v345 = vadd.f32 %v306, %v313
      %v346 = vadd.f32 %v307, %v313
      %v347 = vmax.f32 %v315, 0.0
      %v348 = vmax.f32 %v316, 0.0
      %v349 = vmax.f32 %v317, 0.0
      %v350 = vmax.f32 %v318, 0.0
      %v351 = vmax.f32 %v319, 0.0
      %v352 = vmax.f32 %v320, 0.0
      %v353 = vmax.f32 %v321, 0.0
      %v354 = vmax.f32 %v322, 0.0
      %v355 = vmax.f32 %v323, 0.0
      %v356 = vmax.f32 %v324, 0.0
      %v357 = vmax.f32 %v325, 0.0
      %v358 = vmax.f32 %v326, 0.0
      %v359 = vmax.f32 %v327, 0.0
      %v360 = vmax.f32 %v328, 0.0
      %v361 = vmax.f32 %v329, 0.0
      %v362 = vmax.f32 %v330, 0.0
      %v363 = vmax.f32 %v331, 0.0
      %v364 = vmax.f32 %v332, 0.0
      %v365 = vmax.f32 %v333, 0.0
      %v366 = vmax.f32 %v334, 0.0
      %v367 = vmax.f32 %v335, 0.0
      %v368 = vmax.f32 %v336, 0.0
      %v369 = vmax.f32 %v337, 0.0
      %v370 = vmax.f32 %v338, 0.0
      %v371 = vmax.f32 %v339, 0.0
      %v372 = vmax.f32 %v340, 0.0
      %v373 = vmax.f32 %v341, 0.0
      %v374 = vmax.f32 %v342, 0.0
      %v375 = vmax.f32 %v343, 0.0
      %v376 = vmax.f32 %v344, 0.0
      %v377 = vmax.f32 %v345, 0.0
      %v378 = vmax.f32 %v346, 0.0
      %v379 = vld [vmem:[%s3] sm:$0xf]
      %vm380 = vcmask 31744
      %v382 = vsel %vm380, %v347, 0
      %v385 = vsel %vm380, %v348, 0
      %v388 = vsel %vm380, %v349, 0
      %v391 = vsel %vm380, %v350, 0
      %v394 = vsel %vm380, %v351, 0
      %v397 = vsel %vm380, %v352, 0
      %v400 = vsel %vm380, %v353, 0
      %v403 = vsel %vm380, %v354, 0
      %v406 = vsel %vm380, %v355, 0
      %v409 = vsel %vm380, %v356, 0
      %v412 = vsel %vm380, %v357, 0
      %v415 = vsel %vm380, %v358, 0
      %v418 = vsel %vm380, %v359, 0
      %v421 = vsel %vm380, %v360, 0
      %v424 = vsel %vm380, %v361, 0
      %v427 = vsel %vm380, %v362, 0
      %v430 = vsel %vm380, %v363, 0
      %v433 = vsel %vm380, %v364, 0
      %v436 = vsel %vm380, %v365, 0
      %v439 = vsel %vm380, %v366, 0
      %v442 = vsel %vm380, %v367, 0
      %v445 = vsel %vm380, %v368, 0
      %v448 = vsel %vm380, %v369, 0
      %v451 = vsel %vm380, %v370, 0
      %v454 = vsel %vm380, %v371, 0
      %v457 = vsel %vm380, %v372, 0
      %v460 = vsel %vm380, %v373, 0
      %v463 = vsel %vm380, %v374, 0
      %v466 = vsel %vm380, %v375, 0
      %v469 = vsel %vm380, %v376, 0
      %v472 = vsel %vm380, %v377, 0
      %v475 = vsel %vm380, %v378, 0
      %vm477 = vcmask 1043456
      %v479 = vsel %vm477, %v379, 0
      %481 = vmatprep.subr.mxu0 0.0
      %482 = vmatpush1.msra.mxu0 0.0
      %483 = vmatprep.subr.mxu0 0.0
      %484 = vmatpush1.msra.mxu0 0.0
      %485 = vmatprep.subr.mxu0 0.0
      %486 = vmatpush1.msra.mxu0 0.0
      %487 = vmatprep.subr.mxu0 0.0
      %488 = vmatpush1.msra.mxu0 0.0
      %489 = vmatprep.subr.mxu0 0.0
      %490 = vmatpush1.msra.mxu0 0.0
      %491 = vmatprep.subr.mxu0 0.0
      %492 = vmatpush1.msra.mxu0 0.0
      %493 = vmatprep.subr.mxu0 0.0
      %494 = vmatpush1.msra.mxu0 0.0
      %495 = vmatprep.subr.mxu0 0.0
      %496 = vmatpush1.msra.mxu0 0.0
      %497 = vmatprep.subr.mxu0 0.0
      %498 = vmatpush1.msra.mxu0 0.0
      %499 = vmatprep.subr.mxu0 0.0
      %500 = vmatpush1.msra.mxu0 0.0
      %501 = vmatprep.subr.mxu0 0.0
      %502 = vmatpush1.msra.mxu0 0.0
      %503 = vmatprep.subr.mxu0 0.0
      %504 = vmatpush1.msra.mxu0 0.0
      %505 = vmatprep.subr.mxu0 0.0
      %506 = vmatpush1.msra.mxu0 0.0
      %507 = vmatprep.subr.mxu0 0.0
      %508 = vmatpush1.msra.mxu0 0.0
      %509 = vmatprep.subr.mxu0 0.0
      %510 = vmatpush1.msra.mxu0 0.0
      %511 = vmatprep.subr.mxu0 0.0
      %512 = vmatpush1.msra.mxu0 %v479
      %513 = vmatprep.subr.mxu0 0.0
      %514 = vmatpush2.msra.mxu0 0.0
      %515 = vmatprep.subr.mxu0 0.0
      %516 = vmatpush2.msra.mxu0 0.0
      %517 = vmatprep.subr.mxu0 0.0
      %518 = vmatpush2.msra.mxu0 0.0
      %519 = vmatprep.subr.mxu0 0.0
      %520 = vmatpush2.msra.mxu0 0.0
      %521 = vmatprep.subr.mxu0 0.0
      %522 = vmatpush2.msra.mxu0 0.0
      %523 = vmatprep.subr.mxu0 0.0
      %524 = vmatpush2.msra.mxu0 0.0
      %525 = vmatprep.subr.mxu0 0.0
      %526 = vmatpush2.msra.mxu0 0.0
      %527 = vmatprep.subr.mxu0 0.0
      %528 = vmatpush2.msra.mxu0 0.0
      %529 = vmatprep.subr.mxu0 0.0
      %530 = vmatpush2.msra.mxu0 0.0
      %531 = vmatprep.subr.mxu0 0.0
      %532 = vmatpush2.msra.mxu0 0.0
      %533 = vmatprep.subr.mxu0 0.0
      %534 = vmatpush2.msra.mxu0 0.0
      %535 = vmatprep.subr.mxu0 0.0
      %536 = vmatpush2.msra.mxu0 0.0
      %537 = vmatprep.subr.mxu0 0.0
      %538 = vmatpush2.msra.mxu0 0.0
      %539 = vmatprep.subr.mxu0 0.0
      %540 = vmatpush2.msra.mxu0 0.0
      %541 = vmatprep.subr.mxu0 0.0
      %542 = vmatpush2.msra.mxu0 0.0
      %543 = vmatprep.subr.mxu0 0.0
      %544 = vmatpush2.msra.mxu0 0.0
      %545 = vmatprep.mubr.f32.mxu0 0.0
      %546 = vmatmul.mubr.f32.gmra.mxu0 %v382
      %v547 = vpop.f32.mrf.mxu0
      %v548 = vadd.f32 0.0, %v547
      %v549 = vpop.f32.mrf.mxu0
      %550 = vmatprep.mubr.f32.mxu0 0.0
      %551 = vmatmul.mubr.f32.gmra.mxu0 %v385
      %v552 = vpop.f32.mrf.mxu0
      %v553 = vadd.f32 0.0, %v552
      %v554 = vpop.f32.mrf.mxu0
      %555 = vmatprep.mubr.f32.mxu0 0.0
      %556 = vmatmul.mubr.f32.gmra.mxu0 %v388
      %v557 = vpop.f32.mrf.mxu0
      %v558 = vadd.f32 0.0, %v557
      %v559 = vpop.f32.mrf.mxu0
      %560 = vmatprep.mubr.f32.mxu0 0.0
      %561 = vmatmul.mubr.f32.gmra.mxu0 %v391
      %v562 = vpop.f32.mrf.mxu0
      %v563 = vadd.f32 0.0, %v562
      %v564 = vpop.f32.mrf.mxu0
      %565 = vmatprep.mubr.f32.mxu0 0.0
      %566 = vmatmul.mubr.f32.gmra.mxu0 %v394
      %v567 = vpop.f32.mrf.mxu0
      %v568 = vadd.f32 0.0, %v567
      %v569 = vpop.f32.mrf.mxu0
      %570 = vmatprep.mubr.f32.mxu0 0.0
      %571 = vmatmul.mubr.f32.gmra.mxu0 %v397
      %v572 = vpop.f32.mrf.mxu0
      %v573 = vadd.f32 0.0, %v572
      %v574 = vpop.f32.mrf.mxu0
      %575 = vmatprep.mubr.f32.mxu0 0.0
      %576 = vmatmul.mubr.f32.gmra.mxu0 %v400
      %v577 = vpop.f32.mrf.mxu0
      %v578 = vadd.f32 0.0, %v577
      %v579 = vpop.f32.mrf.mxu0
      %580 = vmatprep.mubr.f32.mxu0 0.0
      %581 = vmatmul.mubr.f32.gmra.mxu0 %v403
      %v582 = vpop.f32.mrf.mxu0
      %v583 = vadd.f32 0.0, %v582
      %v584 = vpop.f32.mrf.mxu0
      %585 = vmatprep.mubr.f32.mxu0 0.0
      %586 = vmatmul.mubr.f32.gmra.mxu0 %v406
      %v587 = vpop.f32.mrf.mxu0
      %v588 = vadd.f32 0.0, %v587
      %v589 = vpop.f32.mrf.mxu0
      %590 = vmatprep.mubr.f32.mxu0 0.0
      %591 = vmatmul.mubr.f32.gmra.mxu0 %v409
      %v592 = vpop.f32.mrf.mxu0
      %v593 = vadd.f32 0.0, %v592
      %v594 = vpop.f32.mrf.mxu0
      %595 = vmatprep.mubr.f32.mxu0 0.0
      %596 = vmatmul.mubr.f32.gmra.mxu0 %v412
      %v597 = vpop.f32.mrf.mxu0
      %v598 = vadd.f32 0.0, %v597
      %v599 = vpop.f32.mrf.mxu0
      %600 = vmatprep.mubr.f32.mxu0 0.0
      %601 = vmatmul.mubr.f32.gmra.mxu0 %v415
      %v602 = vpop.f32.mrf.mxu0
      %v603 = vadd.f32 0.0, %v602
      %v604 = vpop.f32.mrf.mxu0
      %605 = vmatprep.mubr.f32.mxu0 0.0
      %606 = vmatmul.mubr.f32.gmra.mxu0 %v418
      %v607 = vpop.f32.mrf.mxu0
      %v608 = vadd.f32 0.0, %v607
      %v609 = vpop.f32.mrf.mxu0
      %610 = vmatprep.mubr.f32.mxu0 0.0
      %611 = vmatmul.mubr.f32.gmra.mxu0 %v421
      %v612 = vpop.f32.mrf.mxu0
      %v613 = vadd.f32 0.0, %v612
      %v614 = vpop.f32.mrf.mxu0
      %615 = vmatprep.mubr.f32.mxu0 0.0
      %616 = vmatmul.mubr.f32.gmra.mxu0 %v424
      %v617 = vpop.f32.mrf.mxu0
      %v618 = vadd.f32 0.0, %v617
      %v619 = vpop.f32.mrf.mxu0
      %620 = vmatprep.mubr.f32.mxu0 0.0
      %621 = vmatmul.mubr.f32.gmra.mxu0 %v427
      %v622 = vpop.f32.mrf.mxu0
      %v623 = vadd.f32 0.0, %v622
      %v624 = vpop.f32.mrf.mxu0
      %625 = vmatprep.mubr.f32.mxu0 0.0
      %626 = vmatmul.mubr.f32.gmra.mxu0 %v430
      %v627 = vpop.f32.mrf.mxu0
      %v628 = vadd.f32 0.0, %v627
      %v629 = vpop.f32.mrf.mxu0
      %630 = vmatprep.mubr.f32.mxu0 0.0
      %631 = vmatmul.mubr.f32.gmra.mxu0 %v433
      %v632 = vpop.f32.mrf.mxu0
      %v633 = vadd.f32 0.0, %v632
      %v634 = vpop.f32.mrf.mxu0
      %635 = vmatprep.mubr.f32.mxu0 0.0
      %636 = vmatmul.mubr.f32.gmra.mxu0 %v436
      %v637 = vpop.f32.mrf.mxu0
      %v638 = vadd.f32 0.0, %v637
      %v639 = vpop.f32.mrf.mxu0
      %640 = vmatprep.mubr.f32.mxu0 0.0
      %641 = vmatmul.mubr.f32.gmra.mxu0 %v439
      %v642 = vpop.f32.mrf.mxu0
      %v643 = vadd.f32 0.0, %v642
      %v644 = vpop.f32.mrf.mxu0
      %645 = vmatprep.mubr.f32.mxu0 0.0
      %646 = vmatmul.mubr.f32.gmra.mxu0 %v442
      %v647 = vpop.f32.mrf.mxu0
      %v648 = vadd.f32 0.0, %v647
      %v649 = vpop.f32.mrf.mxu0
      %650 = vmatprep.mubr.f32.mxu0 0.0
      %651 = vmatmul.mubr.f32.gmra.mxu0 %v445
      %v652 = vpop.f32.mrf.mxu0
      %v653 = vadd.f32 0.0, %v652
      %v654 = vpop.f32.mrf.mxu0
      %655 = vmatprep.mubr.f32.mxu0 0.0
      %656 = vmatmul.mubr.f32.gmra.mxu0 %v448
      %v657 = vpop.f32.mrf.mxu0
      %v658 = vadd.f32 0.0, %v657
      %v659 = vpop.f32.mrf.mxu0
      %660 = vmatprep.mubr.f32.mxu0 0.0
      %661 = vmatmul.mubr.f32.gmra.mxu0 %v451
      %v662 = vpop.f32.mrf.mxu0
      %v663 = vadd.f32 0.0, %v662
      %v664 = vpop.f32.mrf.mxu0
      %665 = vmatprep.mubr.f32.mxu0 0.0
      %666 = vmatmul.mubr.f32.gmra.mxu0 %v454
      %v667 = vpop.f32.mrf.mxu0
      %v668 = vadd.f32 0.0, %v667
      %v669 = vpop.f32.mrf.mxu0
      %670 = vmatprep.mubr.f32.mxu0 0.0
      %671 = vmatmul.mubr.f32.gmra.mxu0 %v457
      %v672 = vpop.f32.mrf.mxu0
      %v673 = vadd.f32 0.0, %v672
      %v674 = vpop.f32.mrf.mxu0
      %675 = vmatprep.mubr.f32.mxu0 0.0
      %676 = vmatmul.mubr.f32.gmra.mxu0 %v460
      %v677 = vpop.f32.mrf.mxu0
      %v678 = vadd.f32 0.0, %v677
      %v679 = vpop.f32.mrf.mxu0
      %680 = vmatprep.mubr.f32.mxu0 0.0
      %681 = vmatmul.mubr.f32.gmra.mxu0 %v463
      %v682 = vpop.f32.mrf.mxu0
      %v683 = vadd.f32 0.0, %v682
      %v684 = vpop.f32.mrf.mxu0
      %685 = vmatprep.mubr.f32.mxu0 0.0
      %686 = vmatmul.mubr.f32.gmra.mxu0 %v466
      %v687 = vpop.f32.mrf.mxu0
      %v688 = vadd.f32 0.0, %v687
      %v689 = vpop.f32.mrf.mxu0
      %690 = vmatprep.mubr.f32.mxu0 0.0
      %691 = vmatmul.mubr.f32.gmra.mxu0 %v469
      %v692 = vpop.f32.mrf.mxu0
      %v693 = vadd.f32 0.0, %v692
      %v694 = vpop.f32.mrf.mxu0
      %695 = vmatprep.mubr.f32.mxu0 0.0
      %696 = vmatmul.mubr.f32.gmra.mxu0 %v472
      %v697 = vpop.f32.mrf.mxu0
      %v698 = vadd.f32 0.0, %v697
      %v699 = vpop.f32.mrf.mxu0
      %700 = vmatprep.mubr.f32.mxu0 0.0
      %701 = vmatmul.mubr.f32.gmra.mxu0 %v475
      %v702 = vpop.f32.mrf.mxu0
      %v703 = vadd.f32 0.0, %v702
      %v704 = vpop.f32.mrf.mxu0
      %705 = vdwg.mxu0
      %vm706 = vcmask 130048
      %707 = vst.msk [vmem:[%s235] sm:$0xff] %vm706, %v548
      %708 = vst.msk [vmem:[%s235 + $0x8] sm:$0xff] %vm706, %v553
      %709 = vst.msk [vmem:[%s235 + $0x10] sm:$0xff] %vm706, %v558
      %710 = vst.msk [vmem:[%s235 + $0x18] sm:$0xff] %vm706, %v563
      %711 = vst.msk [vmem:[%s235 + $0x20] sm:$0xff] %vm706, %v568
      %712 = vst.msk [vmem:[%s235 + $0x28] sm:$0xff] %vm706, %v573
      %713 = vst.msk [vmem:[%s235 + $0x30] sm:$0xff] %vm706, %v578
      %714 = vst.msk [vmem:[%s235 + $0x38] sm:$0xff] %vm706, %v583
      %715 = vst.msk [vmem:[%s235 + $0x40] sm:$0xff] %vm706, %v588
      %716 = vst.msk [vmem:[%s235 + $0x48] sm:$0xff] %vm706, %v593
      %717 = vst.msk [vmem:[%s235 + $0x50] sm:$0xff] %vm706, %v598
      %718 = vst.msk [vmem:[%s235 + $0x58] sm:$0xff] %vm706, %v603
      %719 = vst.msk [vmem:[%s235 + $0x60] sm:$0xff] %vm706, %v608
      %720 = vst.msk [vmem:[%s235 + $0x68] sm:$0xff] %vm706, %v613
      %721 = vst.msk [vmem:[%s235 + $0x70] sm:$0xff] %vm706, %v618
      %722 = vst.msk [vmem:[%s235 + $0x78] sm:$0xff] %vm706, %v623
      %723 = vst.msk [vmem:[%s235 + $0x80] sm:$0xff] %vm706, %v628
      %724 = vst.msk [vmem:[%s235 + $0x88] sm:$0xff] %vm706, %v633
      %725 = vst.msk [vmem:[%s235 + $0x90] sm:$0xff] %vm706, %v638
      %726 = vst.msk [vmem:[%s235 + $0x98] sm:$0xff] %vm706, %v643
      %727 = vst.msk [vmem:[%s235 + $0xa0] sm:$0xff] %vm706, %v648
      %728 = vst.msk [vmem:[%s235 + $0xa8] sm:$0xff] %vm706, %v653
      %729 = vst.msk [vmem:[%s235 + $0xb0] sm:$0xff] %vm706, %v658
      %730 = vst.msk [vmem:[%s235 + $0xb8] sm:$0xff] %vm706, %v663
      %731 = vst.msk [vmem:[%s235 + $0xc0] sm:$0xff] %vm706, %v668
      %732 = vst.msk [vmem:[%s235 + $0xc8] sm:$0xff] %vm706, %v673
      %733 = vst.msk [vmem:[%s235 + $0xd0] sm:$0xff] %vm706, %v678
      %734 = vst.msk [vmem:[%s235 + $0xd8] sm:$0xff] %vm706, %v683
      %735 = vst.msk [vmem:[%s235 + $0xe0] sm:$0xff] %vm706, %v688
      %736 = vst.msk [vmem:[%s235 + $0xe8] sm:$0xff] %vm706, %v693
      %737 = vst.msk [vmem:[%s235 + $0xf0] sm:$0xff] %vm706, %v698
      %738 = vst.msk [vmem:[%s235 + $0xf8] sm:$0xff] %vm706, %v703
      %s739 = smul.u32 32, %s20
      %p740 = scmp.lt.s32.totalorder %s19, 1
      %s741 = scalar_select %p740, %s19, 1
      %p742 = scmp.lt.s32.totalorder %s739, 31
      %s743 = scalar_select %p742, %s739, 31
      %s744 = smul.addr %s741, 32
      %s745 = sadd.s32 %s743, %s744
      %s746 = smul.addr %s745, 8
      %s747 = scalar_lea.vmem %s4, %s746
      // Predicated region
      $region37: #{tpu_custom_call.1} parent=35 // pred_check
        %p748 = pneg %p138
      $region38: #{tpu_custom_call.1} parent=35 // pred_check_branch
        %750 = sbr.rel (%p748) target = $region40
      $region39: #{tpu_custom_call.1} parent=35 // pred_region
        %s751 = smul.u32 32, %s20
      $region40: #{tpu_custom_call.1} parent=35 // pred_fallthru
        _
    $region36: #{tpu_custom_call.1} parent=5 // pred_fallthru
      _
    %p752 = scmp.le.s32.totalorder 2, %s10
    // Predicated region
    $region41: #{tpu_custom_call.1} parent=5 // pred_check
      %p753 = pneg %p752
    $region42: #{tpu_custom_call.1} parent=5 // pred_check_branch
      %755 = sbr.rel (%p753) target = $region44
    $region43: #{tpu_custom_call.1} parent=5 // pred_region
      %s756 = ssub.s32 %s10, 2
      // Predicated region
      $region45: #{tpu_custom_call.1} parent=43 // pred_check
        %p757 = pneg %p144
      $region46: #{tpu_custom_call.1} parent=43 // pred_check_branch
        %759 = sbr.rel (%p757) target = $region48
      $region47: #{tpu_custom_call.1} parent=43 // pred_region
        %s760 = smul.u32 32, %s22
        %p761 = scmp.lt.s32.totalorder %s21, 1
        %s762 = scalar_select %p761, %s21, 1
        %p763 = scmp.lt.s32.totalorder %s760, 31
        %s764 = scalar_select %p763, %s760, 31
        %s765 = smul.addr %s762, 32
        %s766 = sadd.s32 %s764, %s765
        %s767 = smul.addr %s766, 8
        %s768 = scalar_lea.vmem %s4, %s767
      $region48: #{tpu_custom_call.1} parent=43 // pred_fallthru
        _
    $region44: #{tpu_custom_call.1} parent=5 // pred_fallthru
      _
  $region6: #{tpu_custom_call.1} parent=0 // loop_footer
    %s14 = sadd.s32 1, %s10
  $region7: #{tpu_custom_call.1} parent=0 // loop_footer_branch
    %9 = sbr.rel target = $region3
  $region8: #{tpu_custom_call.1} parent=0 // loop_exit
    _

</llo_original>
